<compile_context>
chip_gen: v7x
topology: tpu7x:2x2x1
jax: 0.10.0
libtpu: 0.0.40
codegen_flags: <defaults>
</compile_context>

<pallas_src>
import jax
import jax.numpy as jnp
from jax.experimental import pallas as pl
from jax.experimental.pallas import tpu as pltpu


_MAX_CHUNKS = 4                      # concurrent DMAs in flight
_MIN_CHUNK_BYTES = 1 * 1024 * 1024   # don't bother splitting below ~1 MiB/chunk


def _chunk_plan(shape, dtype):
    """Static plan: (num_chunks, leading-axis boundaries or None)."""
    if len(shape) == 0:
        return 1, None
    itemsize = jnp.dtype(dtype).itemsize
    n0 = shape[0]
    row_bytes = itemsize
    for d in shape[1:]:
        row_bytes *= d
    total_bytes = row_bytes * n0
    if total_bytes < 2 * _MIN_CHUNK_BYTES:
        return 1, None

    # Keep chunk starts aligned to the HBM tile layout of the leading axis.
    sublane = max(8, 32 // max(itemsize, 1))   # 8 f32 / 16 bf16 / 32 int8
    if len(shape) >= 3:
        gran = 1                  # leading axis is not a tiled dim
    elif len(shape) == 2:
        gran = sublane            # leading axis is the sublane dim
    else:
        gran = sublane * 128      # 1-D: align to whole (sublane,128) tiles

    nchunks = min(_MAX_CHUNKS, total_bytes // _MIN_CHUNK_BYTES, n0 // max(gran, 1))
    nchunks = max(1, int(nchunks))
    if nchunks == 1:
        return 1, None

    base = (n0 // nchunks) - ((n0 // nchunks) % gran)
    if base == 0:
        return 1, None
    bounds = tuple(c * base for c in range(nchunks)) + (n0,)
    return nchunks, bounds


def _make_dma_copy_kernel(nchunks, bounds):
    """HBM->HBM memcpy kernel: start all chunk DMAs, then wait on all."""

    def kernel(x_hbm, o_hbm, sem):
        copies = []
        for c in range(nchunks):
            if nchunks == 1:
                src, dst = x_hbm, o_hbm
            else:
                start = bounds[c]
                size = bounds[c + 1] - bounds[c]
                src = x_hbm.at[pl.ds(start, size)]
                dst = o_hbm.at[pl.ds(start, size)]
            cp = pltpu.make_async_copy(src, dst, sem.at[c])
            cp.start()
            copies.append(cp)
        for cp in copies:
            cp.wait()

    return kernel


def identity(x: jax.Array, *, donate: bool = False) -> jax.Array:
    """Pallas TPU implementation of nn.Identity-style forward: return x.

    If the caller donates its buffer (donate=True), Identity needs no copy at
    all and we return x directly (zero HBM traffic).  Otherwise a chunked
    HBM->HBM DMA produces a fresh output buffer bit-identical to x.
    """
    if donate:
        return x
    if x.size == 0:
        return x

    nchunks, bounds = _chunk_plan(x.shape, x.dtype)
    nbytes = x.size * jnp.dtype(x.dtype).itemsize

    return pl.pallas_call(
        _make_dma_copy_kernel(nchunks, bounds),
        out_shape=jax.ShapeDtypeStruct(x.shape, x.dtype),
        in_specs=[pl.BlockSpec(memory_space=pl.ANY)],
        out_specs=pl.BlockSpec(memory_space=pl.ANY),
        scratch_shapes=[pltpu.SemaphoreType.DMA((nchunks,))],
        cost_estimate=pl.CostEstimate(
            flops=0, transcendentals=0, bytes_accessed=2 * nbytes),
    )(x)


if __name__ == "__main__":
    key = jax.random.PRNGKey(0)

    # Small NCHW input consistent with a typical conv-net feature map.
    x = jax.random.normal(key, (2, 4, 16, 16), dtype=jnp.float32)
    y = identity(x)
    jax.block_until_ready(y)
    assert y.shape == x.shape and y.dtype == x.dtype
    assert bool(jnp.array_equal(y, x))

    # Narrow dtype (bf16): DMA path is layout/packing agnostic.
    xb = jax.random.normal(key, (2, 4, 16, 16), dtype=jnp.bfloat16)
    yb = identity(xb)
    jax.block_until_ready(yb)
    assert yb.shape == xb.shape and yb.dtype == xb.dtype
    assert bool(jnp.array_equal(yb, xb))

    # Awkward size: no padding / slicing needed by the HBM->HBM DMA path.
    xo = jax.random.normal(key, (3, 5, 7), dtype=jnp.float32)
    yo = identity(xo)
    jax.block_until_ready(yo)
    assert yo.shape == xo.shape and yo.dtype == xo.dtype
    assert bool(jnp.array_equal(yo, xo))

    # Larger input to exercise the multi-chunk (parallel DMA) path.
    xl = jax.random.normal(key, (8, 512, 512), dtype=jnp.float32)
    yl = identity(xl)
    jax.block_until_ready(yl)
    assert yl.shape == xl.shape and yl.dtype == xl.dtype
    assert bool(jnp.array_equal(yl, xl))

    # Donated-input fast path: true Identity, no kernel launch, no copy.
    yd = identity(x, donate=True)
    assert yd is x

    print("KERNEL_OK")
</pallas_src>

<mosaic_0001>
module attributes {stable_mosaic.version = 11 : i64} {
  func.func @kernel(%arg0: memref<2x4x16x16xf32, #tpu.memory_space<any>>, %arg1: memref<2x4x16x16xf32, #tpu.memory_space<any>>, %arg2: memref<1x!tpu.dma_semaphore, #tpu.memory_space<semaphore_mem>>) attributes {dimension_semantics = [], scalar_prefetch = 0 : i64, scratch_operands = 1 : i64, tpu.core_type = #tpu.core_type<tc>} {
    %c0_i32 = arith.constant 0 : i32
    %0 = tpu.memref_slice %arg2[%c0_i32] : memref<1x!tpu.dma_semaphore, #tpu.memory_space<semaphore_mem>> -> memref<1x!tpu.dma_semaphore, #tpu.memory_space<semaphore_mem>>
    %1 = tpu.memref_squeeze %0 : memref<1x!tpu.dma_semaphore, #tpu.memory_space<semaphore_mem>> -> memref<!tpu.dma_semaphore, #tpu.memory_space<semaphore_mem>>
    tpu.enqueue_dma source(%arg0 : memref<2x4x16x16xf32, #tpu.memory_space<any>>) target(%arg1 : memref<2x4x16x16xf32, #tpu.memory_space<any>>) target_semaphore(%1 : memref<!tpu.dma_semaphore, #tpu.memory_space<semaphore_mem>>)
    %c0_i32_0 = arith.constant 0 : i32
    %2 = tpu.memref_slice %arg2[%c0_i32_0] : memref<1x!tpu.dma_semaphore, #tpu.memory_space<semaphore_mem>> -> memref<1x!tpu.dma_semaphore, #tpu.memory_space<semaphore_mem>>
    %3 = tpu.memref_squeeze %2 : memref<1x!tpu.dma_semaphore, #tpu.memory_space<semaphore_mem>> -> memref<!tpu.dma_semaphore, #tpu.memory_space<semaphore_mem>>
    tpu.wait_dma2 semaphore(%3 : memref<!tpu.dma_semaphore, #tpu.memory_space<semaphore_mem>>) src(%arg0 : memref<2x4x16x16xf32, #tpu.memory_space<any>>) dst(%arg1 : memref<2x4x16x16xf32, #tpu.memory_space<any>>)
    return
  }
}

</mosaic_0001>

<llo_original>
// kernel: tpu_custom_call.1
$region0: #{tpu_custom_call.1}
  #allocation0 [shape = 'u32[]', space=smem, size = 0x4, offset = 0x4, fixed_abs, tag = 'smem constant byte address 0x4 - core index']
  #allocation1 [shape = 'u32[144,128]{1,0:T(1,128)}', space=vmem, size = 0x12000, scoped, tag = 'internal scratch']
  #allocation2 [shape = 's32[1]{0}', space=sflag, size = 0x4, scoped, tag = 'scratch operand']
  #allocation3 [shape = 's32[]', space=sflag, size = 0x4, offset = 0, fixed_abs, tag = 'sflag constant byte address 0x0 - dummy sync flag']
  #allocation4 [shape = 'u32[0]{0}', space=smem, size = 0, offset = 0, fixed_abs, tag = 'smem constant byte address 0x0 - null']
  %s0 = inlined_call_operand.hbm [shape: f32[2,4,16,16], index: 0, kind: input, shape index: {}]
  %s1 = inlined_call_operand.hbm [shape: f32[2,4,16,16], index: 1, kind: output, shape index: {}]
  %s2 = sld [smem:[#allocation0]]
  $region2: #{tpu_custom_call.1} parent=0
    _
  %s4 = ssub.s32 1, %s2
  %s5 = scalar_select 0, %s4, %s2
  %s7 = sshll.u32 1, 14
  %s8 = sxor.u32 4294967295, %s7
  %s11 = sshll.u32 3, 24
  %s12 = sxor.u32 4294967295, %s11
  %s13 = sand.u32 0, %s12
  %s15 = sor.u32 %s13, 0
  %18 = dma.general %s0, 2048, %s1, [#allocation2], [#allocation3], [#allocation4], %s15, 0
  %s19 = smul.u32 2, 4
  %s20 = smul.u32 %s19, 16
  %s21 = smul.u32 %s20, 1
  %s22 = sshll.u32 %s21, 4
  %23 = dma.done [#allocation2], %s22
  %24 = vsyncmov [#allocation2]
  %s25 = vpop.sfrf %24
  %p26 = scmp.eq.s32.totalorder %s25, 0
  %p27 = pneg %p26
  %29 = shalt.err (%p27)

</llo_original>
